<compile_context>
chip_gen: v5e
topology: v5e:2x2
jax: 0.10.0
libtpu: 0.0.40
codegen_flags: <defaults>
</compile_context>

<pallas_src>
import functools

import jax
import jax.numpy as jnp
from jax import lax
from jax.experimental import pallas as pl
from jax.experimental.pallas import tpu as pltpu


def _round_up(x, m):
    return ((x + m - 1) // m) * m


def bigram_kernel(idx_ref, tgt_ref, table_ref, logits_ref, loss_ref,
                  *, inv_bt, seq_len, tile_bt):
    i = pl.program_id(0)
    tb = idx_ref.shape[0]
    k_pad = table_ref.shape[0]          # rows of combined table
    v_pad = table_ref.shape[1]          # padded vocab (== #bigram rows)

    # Position id per flattened row: (i*tile_bt + r) mod T.  No memory read.
    row = lax.broadcasted_iota(jnp.int32, (tb, 1), 0) + i * tile_bt
    pos = lax.rem(row, seq_len)

    # Two-hot over the combined [bigram ; pos_logits ; 0] table: row r has a 1
    # at idx[r] and a 1 at v_pad + pos[r].  Single MXU matmul -> full logits.
    col_k = lax.broadcasted_iota(jnp.int32, (tb, k_pad), 1)
    twohot = ((col_k == idx_ref[...]) |
              (col_k == pos + v_pad)).astype(table_ref.dtype)        # (tb, K_pad)
    logits = jnp.dot(twohot, table_ref[...],
                     preferred_element_type=jnp.float32)             # (tb, V_pad)
    logits_ref[...] = logits.astype(logits_ref.dtype)                # lane-dense store

    # Cross-entropy for this tile (padded vocab columns hold -1e30 -> exp == 0).
    col_v = lax.broadcasted_iota(jnp.int32, (tb, v_pad), 1)
    m = jnp.max(logits, axis=-1, keepdims=True)                      # (tb, 1)
    lse = m + jnp.log(jnp.sum(jnp.exp(logits - m), axis=-1, keepdims=True))
    tgt_logit = jnp.sum(jnp.where(tgt_ref[...] == col_v, logits, 0.0),
                        axis=-1, keepdims=True)                      # (tb, 1)
    tile_sum = jnp.sum(lse - tgt_logit, axis=0, keepdims=True)       # (1, 1)

    # Streamed loss accumulation in the resident (1,1) output block.
    @pl.when(i == 0)
    def _():
        loss_ref[...] = jnp.zeros_like(loss_ref)

    loss_ref[...] += tile_sum

    @pl.when(i == pl.num_programs(0) - 1)
    def _():
        loss_ref[...] = loss_ref[...] * inv_bt


def bigram_forward(idx, targets, tok_table, pos_table, W, b, *, tile_bt=None):
    """idx, targets: (B, T) int32.  Returns (logits (B, T, V), scalar loss)."""
    B, T = idx.shape
    V, E = tok_table.shape
    BT = B * T

    if tile_bt is None:
        tile_bt = BT if BT <= 256 else 256
    assert BT % tile_bt == 0, "B*T must be divisible by tile_bt"
    assert tile_bt == BT or tile_bt % 8 == 0, "tile_bt must be sublane-aligned"
    n_tiles = BT // tile_bt

    V_pad = _round_up(V, 128)
    K_pad = _round_up(V_pad + T, 128)
    NEG = -1e30  # padded vocab columns: exp(NEG - max) == 0, so LSE is unchanged

    # --- fuse static weights once in the wrapper (high precision) ---
    hp = jax.lax.Precision.HIGHEST
    W_t = W.T                                                         # (E, V)
    bigram = jnp.dot(tok_table, W_t, precision=hp) + b[None, :]       # (V, V)
    pos_logits = jnp.dot(pos_table[:T], W_t, precision=hp)            # (T, V)

    # --- combined resident table (K_pad, V_pad) ---
    #   rows [0, V_pad)        : bigram (padded cols = NEG, padded rows unused)
    #   rows [V_pad, V_pad+T)  : positional logits (padded cols = 0)
    #   rows [V_pad+T, K_pad)  : zeros (never selected)
    bigram_pad = jnp.pad(bigram, ((0, V_pad - V), (0, 0)))
    bigram_pad = jnp.pad(bigram_pad, ((0, 0), (0, V_pad - V)), constant_values=NEG)
    pos_pad = jnp.pad(pos_logits, ((0, 0), (0, V_pad - V)))           # (T, V_pad)
    tail = jnp.zeros((K_pad - V_pad - T, V_pad), jnp.float32)
    table = jnp.concatenate([bigram_pad, pos_pad, tail], axis=0)      # (K_pad, V_pad)

    idx_flat = idx.reshape(BT, 1).astype(jnp.int32)
    tgt_flat = targets.reshape(BT, 1).astype(jnp.int32)

    kernel = functools.partial(bigram_kernel, inv_bt=1.0 / BT,
                               seq_len=T, tile_bt=tile_bt)

    logits_pad, loss = pl.pallas_call(
        kernel,
        out_shape=(
            jax.ShapeDtypeStruct((BT, V_pad), jnp.float32),
            jax.ShapeDtypeStruct((1, 1), jnp.float32),
        ),
        grid_spec=pltpu.PrefetchScalarGridSpec(
            num_scalar_prefetch=0,
            grid=(n_tiles,),
            in_specs=[
                pl.BlockSpec((tile_bt, 1), lambda i: (i, 0)),         # idx
                pl.BlockSpec((tile_bt, 1), lambda i: (i, 0)),         # targets
                pl.BlockSpec((K_pad, V_pad), lambda i: (0, 0)),       # combined table (resident)
            ],
            out_specs=(
                pl.BlockSpec((tile_bt, V_pad), lambda i: (i, 0)),     # logits
                pl.BlockSpec((1, 1), lambda i: (0, 0)),               # loss accumulator
            ),
        ),
        compiler_params=pltpu.CompilerParams(
            dimension_semantics=("arbitrary",),                       # loss reduction axis
        ),
    )(idx_flat, tgt_flat, table)

    logits = logits_pad[:, :V].reshape(B, T, V)
    return logits, loss[0, 0]


def reference_forward(idx, targets, tok_table, pos_table, W, b):
    B, T = idx.shape
    tkn = tok_table[idx]                       # (B, T, E)
    pos = pos_table[jnp.arange(T)]             # (T, E)
    x = tkn + pos[None, :, :]
    logits = x @ W.T + b                       # (B, T, V)
    V = logits.shape[-1]
    lf = logits.reshape(-1, V)
    tf = targets.reshape(-1)
    lse = jax.nn.logsumexp(lf, axis=-1)
    tgt_logit = jnp.take_along_axis(lf, tf[:, None], axis=-1)[:, 0]
    loss = jnp.mean(lse - tgt_logit)
    return logits, loss


if __name__ == "__main__":
    vocab_size = 65
    n_embd = 32
    block_size = 8
    B, T = 2, 8

    key = jax.random.PRNGKey(0)
    k1, k2, k3, k4, k5, k6 = jax.random.split(key, 6)

    tok_table = jax.random.normal(k1, (vocab_size, n_embd), jnp.float32)
    pos_table = jax.random.normal(k2, (block_size, n_embd), jnp.float32)
    W = jax.random.normal(k3, (vocab_size, n_embd), jnp.float32) * (1.0 / jnp.sqrt(n_embd))
    bias = jax.random.normal(k4, (vocab_size,), jnp.float32) * 0.01

    idx = jax.random.randint(k5, (B, T), 0, vocab_size, dtype=jnp.int32)
    targets = jax.random.randint(k6, (B, T), 0, vocab_size, dtype=jnp.int32)

    # tile_bt=8 -> grid=(2,): exercises streamed loss accumulation + in-kernel
    # position reconstruction across tile boundaries.
    logits, loss = bigram_forward(idx, targets, tok_table, pos_table, W, bias, tile_bt=8)
    jax.block_until_ready((logits, loss))

    ref_logits, ref_loss = reference_forward(idx, targets, tok_table, pos_table, W, bias)
    assert logits.shape == (B, T, vocab_size)
    assert jnp.allclose(logits, ref_logits, atol=1e-4, rtol=1e-4)
    assert jnp.allclose(loss, ref_loss, atol=1e-4, rtol=1e-4)

    print("KERNEL_OK")
</pallas_src>

<mosaic_0001>
module attributes {stable_mosaic.version = 11 : i64} {
  func.func @bigram_kernel(%arg0: i32, %arg1: memref<8x1xi32, #tpu.memory_space<vmem>>, %arg2: memref<8x1xi32, #tpu.memory_space<vmem>>, %arg3: memref<256x128xf32, #tpu.memory_space<vmem>>, %arg4: memref<8x128xf32, #tpu.memory_space<vmem>>, %arg5: memref<1x1xf32, #tpu.memory_space<vmem>>) attributes {dimension_semantics = [#tpu.dimension_semantics<arbitrary>], iteration_bounds = array<i64: 2>, scalar_prefetch = 0 : i64, scratch_operands = 0 : i64, tpu.core_type = #tpu.core_type<tc>, window_params = [{transform_indices = @transform_0, window_bounds = array<i64: 8, 1>}, {transform_indices = @transform_1, window_bounds = array<i64: 8, 1>}, {pipeline_mode = #tpu.pipeline_mode<synchronous>, transform_indices = @transform_2, window_bounds = array<i64: 256, 128>}, {transform_indices = @transform_3, window_bounds = array<i64: 8, 128>}, {pipeline_mode = #tpu.pipeline_mode<synchronous>, transform_indices = @transform_4, window_bounds = array<i64: 1, 1>}]} {
    %0 = tpu.iota {dimensions = array<i32: 0>} : vector<8x1xi32>
    %c8_i32 = arith.constant 8 : i32
    %1 = arith.muli %arg0, %c8_i32 : i32
    %2 = vector.broadcast %1 : i32 to vector<8x1xi32>
    %3 = arith.addi %0, %2 : vector<8x1xi32>
    %c8_i32_0 = arith.constant 8 : i32
    %4 = vector.broadcast %c8_i32_0 : i32 to vector<8x1xi32>
    %5 = arith.remsi %3, %4 : vector<8x1xi32>
    %6 = tpu.iota {dimensions = array<i32: 1>} : vector<8x256xi32>
    %c0 = arith.constant 0 : index
    %c0_1 = arith.constant 0 : index
    %7 = vector.load %arg1[%c0, %c0_1] : memref<8x1xi32, #tpu.memory_space<vmem>>, vector<8x1xi32>
    %8 = vector.broadcast %7 : vector<8x1xi32> to vector<8x256xi32>
    %9 = arith.cmpi eq, %6, %8 : vector<8x256xi32>
    %c128_i32 = arith.constant 128 : i32
    %10 = vector.broadcast %c128_i32 : i32 to vector<8x1xi32>
    %11 = arith.addi %5, %10 : vector<8x1xi32>
    %12 = vector.broadcast %11 : vector<8x1xi32> to vector<8x256xi32>
    %13 = arith.cmpi eq, %6, %12 : vector<8x256xi32>
    %14 = arith.ori %9, %13 : vector<8x256xi1>
    %15 = arith.extui %14 : vector<8x256xi1> to vector<8x256xi32>
    %16 = arith.sitofp %15 : vector<8x256xi32> to vector<8x256xf32>
    %c0_2 = arith.constant 0 : index
    %c0_3 = arith.constant 0 : index
    %17 = vector.load %arg3[%c0_2, %c0_3] : memref<256x128xf32, #tpu.memory_space<vmem>>, vector<256x128xf32>
    %cst = arith.constant dense<0.000000e+00> : vector<8x128xf32>
    %18 = tpu.matmul %16, %17, %cst {dimension_numbers = #tpu.dot_dimension_numbers<[1], [0], [0], [1], [0, 0, 1, 1], [], []>} : vector<8x256xf32>, vector<256x128xf32>, vector<8x128xf32> -> vector<8x128xf32>
    %c0_4 = arith.constant 0 : index
    %c0_5 = arith.constant 0 : index
    %19 = vector.load %arg4[%c0_4, %c0_5] : memref<8x128xf32, #tpu.memory_space<vmem>>, vector<8x128xf32>
    tpu.vector_store %arg4[%c0_4, %c0_5], %18 {strides = array<i32>} : memref<8x128xf32, #tpu.memory_space<vmem>>, vector<8x128xf32>,
    %20 = tpu.iota {dimensions = array<i32: 1>} : vector<8x128xi32>
    %cst_6 = arith.constant dense<0xFF800000> : vector<8xf32>
    %21 = vector.multi_reduction <maximumf>, %18, %cst_6 [1] : vector<8x128xf32> to vector<8xf32>
    %22 = vector.shape_cast %21 : vector<8xf32> to vector<8x1xf32>
    %23 = vector.broadcast %22 : vector<8x1xf32> to vector<8x128xf32>
    %24 = arith.subf %18, %23 : vector<8x128xf32>
    %25 = math.exp %24 : vector<8x128xf32>
    %cst_7 = arith.constant dense<0.000000e+00> : vector<8xf32>
    %26 = vector.multi_reduction <add>, %25, %cst_7 [1] : vector<8x128xf32> to vector<8xf32>
    %27 = vector.shape_cast %26 : vector<8xf32> to vector<8x1xf32>
    %28 = math.log %27 : vector<8x1xf32>
    %29 = arith.addf %22, %28 : vector<8x1xf32>
    %c0_8 = arith.constant 0 : index
    %c0_9 = arith.constant 0 : index
    %30 = vector.load %arg2[%c0_8, %c0_9] : memref<8x1xi32, #tpu.memory_space<vmem>>, vector<8x1xi32>
    %31 = vector.broadcast %30 : vector<8x1xi32> to vector<8x128xi32>
    %32 = arith.cmpi eq, %31, %20 : vector<8x128xi32>
    %cst_10 = arith.constant 0.000000e+00 : f32
    %33 = vector.broadcast %cst_10 : f32 to vector<8x128xf32>
    %34 = arith.select %32, %18, %33 : vector<8x128xi1>, vector<8x128xf32>
    %cst_11 = arith.constant dense<0.000000e+00> : vector<8xf32>
    %35 = vector.multi_reduction <add>, %34, %cst_11 [1] : vector<8x128xf32> to vector<8xf32>
    %36 = vector.shape_cast %35 : vector<8xf32> to vector<8x1xf32>
    %37 = arith.subf %29, %36 : vector<8x1xf32>
    %cst_12 = arith.constant dense<0.000000e+00> : vector<1xf32>
    %38 = vector.multi_reduction <add>, %37, %cst_12 [0] : vector<8x1xf32> to vector<1xf32>
    %39 = vector.shape_cast %38 : vector<1xf32> to vector<1x1xf32>
    %c0_i32 = arith.constant 0 : i32
    %40 = arith.cmpi eq, %arg0, %c0_i32 : i32
    %41 = arith.extui %40 : i1 to i32
    %c0_i32_13 = arith.constant 0 : i32
    %42 = arith.cmpi ne, %41, %c0_i32_13 : i32
    scf.if %42 {
      %cst_19 = arith.constant 0.000000e+00 : f32
      %49 = vector.broadcast %cst_19 : f32 to vector<1x1xf32>
      %c0_20 = arith.constant 0 : index
      %c0_21 = arith.constant 0 : index
      %50 = vector.load %arg5[%c0_20, %c0_21] : memref<1x1xf32, #tpu.memory_space<vmem>>, vector<1x1xf32>
      tpu.vector_store %arg5[%c0_20, %c0_21], %49 {strides = array<i32>} : memref<1x1xf32, #tpu.memory_space<vmem>>, vector<1x1xf32>,
    } else {
    }
    %c0_14 = arith.constant 0 : index
    %c0_15 = arith.constant 0 : index
    %43 = vector.load %arg5[%c0_14, %c0_15] : memref<1x1xf32, #tpu.memory_space<vmem>>, vector<1x1xf32>
    %44 = arith.addf %43, %39 : vector<1x1xf32>
    %c0_16 = arith.constant 0 : index
    %c0_17 = arith.constant 0 : index
    %45 = vector.load %arg5[%c0_16, %c0_17] : memref<1x1xf32, #tpu.memory_space<vmem>>, vector<1x1xf32>
    tpu.vector_store %arg5[%c0_16, %c0_17], %44 {strides = array<i32>} : memref<1x1xf32, #tpu.memory_space<vmem>>, vector<1x1xf32>,
    %c1_i32 = arith.constant 1 : i32
    %46 = arith.cmpi eq, %arg0, %c1_i32 : i32
    %47 = arith.extui %46 : i1 to i32
    %c0_i32_18 = arith.constant 0 : i32
    %48 = arith.cmpi ne, %47, %c0_i32_18 : i32
    scf.if %48 {
      %c0_19 = arith.constant 0 : index
      %c0_20 = arith.constant 0 : index
      %49 = vector.load %arg5[%c0_19, %c0_20] : memref<1x1xf32, #tpu.memory_space<vmem>>, vector<1x1xf32>
      %cst_21 = arith.constant 6.250000e-02 : f32
      %50 = vector.broadcast %cst_21 : f32 to vector<1x1xf32>
      %51 = arith.mulf %49, %50 : vector<1x1xf32>
      %c0_22 = arith.constant 0 : index
      %c0_23 = arith.constant 0 : index
      %52 = vector.load %arg5[%c0_22, %c0_23] : memref<1x1xf32, #tpu.memory_space<vmem>>, vector<1x1xf32>
      tpu.vector_store %arg5[%c0_22, %c0_23], %51 {strides = array<i32>} : memref<1x1xf32, #tpu.memory_space<vmem>>, vector<1x1xf32>,
    } else {
    }
    return
  }
  func.func @transform_0(%arg0: i32) -> (i32, i32) {
    %c0_i32 = arith.constant 0 : i32
    %c0_i32_0 = arith.constant 0 : i32
    return %arg0, %c0_i32 : i32, i32
  }
  func.func @transform_1(%arg0: i32) -> (i32, i32) {
    %c0_i32 = arith.constant 0 : i32
    %c0_i32_0 = arith.constant 0 : i32
    return %arg0, %c0_i32 : i32, i32
  }
  func.func @transform_2(%arg0: i32) -> (i32, i32) {
    %c0_i32 = arith.constant 0 : i32
    %c0_i32_0 = arith.constant 0 : i32
    %c0_i32_1 = arith.constant 0 : i32
    return %c0_i32, %c0_i32_0 : i32, i32
  }
  func.func @transform_3(%arg0: i32) -> (i32, i32) {
    %c0_i32 = arith.constant 0 : i32
    %c0_i32_0 = arith.constant 0 : i32
    return %arg0, %c0_i32 : i32, i32
  }
  func.func @transform_4(%arg0: i32) -> (i32, i32) {
    %c0_i32 = arith.constant 0 : i32
    %c0_i32_0 = arith.constant 0 : i32
    %c0_i32_1 = arith.constant 0 : i32
    return %c0_i32, %c0_i32_0 : i32, i32
  }
}

</mosaic_0001>

<llo_original>
// kernel: tpu_custom_call.1
$region0: #{tpu_custom_call.1}
  #allocation0 [shape = 'u32[]', space=smem, size = 0x4, offset = 0x4, fixed_abs, tag = 'smem constant byte address 0x4 - core index']
  #allocation1 [shape = 'u32[72,128]{1,0:T(1,128)}', space=vmem, size = 0x9000, scoped, tag = 'internal scratch']
  %s0 = inlined_call_operand.vmem [shape: s32[16,1], index: 0, kind: input, shape index: {}]
  %s1 = inlined_call_operand.vmem [shape: s32[16,1], index: 1, kind: input, shape index: {}]
  %s2 = inlined_call_operand.hbm [shape: f32[256,128], index: 2, kind: input, shape index: {}]
  %s3 = inlined_call_operand.hbm [shape: f32[16,128], index: 3, kind: output, shape index: {0}]
  %s4 = inlined_call_operand.hbm [shape: f32[1,1], index: 4, kind: output, shape index: {1}]
  %5 = xla_tuple %s3, %s4
  %s6 = sld [smem:[#allocation0]]
  $region65: #{tpu_custom_call.1} parent=0
    _
  %s8 = ssub.s32 1, %s6
  %s9 = scalar_select 0, %s8, %s6
  $region1: #{tpu_custom_call.1} parent=0
    #allocation2 [shape = 'u8[131072]{0}', space=vmem, size = 0x20000, scoped, tag = 'input window, operand 2, single buffered']
    #allocation3 [shape = 's32[2]{0}', space=sflag, size = 0x8, scoped, tag = 'scoped memory for tpu_custom_call.1']
    #allocation4 [shape = 's32[2]{0}', space=sflag, size = 0x8, scoped, tag = 'scoped memory for tpu_custom_call.1']
    #allocation5 [shape = 'u8[8192]{0}', space=vmem, size = 0x2000, scoped, tag = 'output window, operand 0']
    #allocation6 [shape = 'u8[512]{0}', space=vmem, size = 0x400, scoped, tag = 'output window, operand 1, single buffered']
    #allocation7 [shape = 's32[1]{0}', space=sflag, size = 0x4, scoped, tag = 'scoped memory for tpu_custom_call.1']
    %10 = vsyncpa [#allocation3], 0
    %11 = vsyncpa [#allocation4], 0
    %s12 = scalar_lea.sflag [#allocation4], 1
    %13 = vsyncpa %s12, 0
    %14 = vsyncpa [#allocation7], 0
    loop: start=0, step=1, limit=4
    $region2: #{tpu_custom_call.1} parent=1 // loop_pre_header
      _
    $region3: #{tpu_custom_call.1} parent=1 // loop_header
      %s16 = sphi 0, %s20
      %p17 = scmp.ge.s32.totalorder %s16, 4
      %s26 = sphi 0, %s28
      %s29 = sphi 0, %s26
      %s30 = sphi 0, %s29
      %s46 = sphi 0, %s30
      %s52 = sphi 0, %s54
      %s55 = sphi 0, %s52
      %s56 = sphi 0, %s55
      %s72 = sphi 0, %s56
      %s76 = sphi 0, %s76
      %s78 = sphi 0, %s76
      %s79 = sphi 0, %s78
      %s93 = sphi 0, %s79
      %s99 = sphi 0, %s101
      %s102 = sphi 0, %s99
      %s103 = sphi 0, %s102
      %s119 = sphi 0, %s103
      %s123 = sphi 0, %s123
      %s125 = sphi 0, %s123
      %s126 = sphi 0, %s125
      %s140 = sphi 0, %s126
    $region4: #{tpu_custom_call.1} parent=1 // loop_header_branch
      %19 = sbr.rel (%p17) target = $region8
    $region5: #{tpu_custom_call.1} parent=1 // loop_body
      %s21 = ssub.s32 %s16, 1
      %s22 = ssub.s32 %s16, 2
      %s23 = sadd.s32 %s16, 1
      %s24 = ssub.s32 %s16, %s23
      %p25 = scmp.eq.s32.totalorder %s24, 0
      %s27 = sadd.s32 %s26, 1
      %s28 = scalar_select %p25, %s26, %s27
      %p31 = pneg %p25
      %p32 = scmp.eq.s32.totalorder %s16, 1
      %p33 = por %p31, %p32
      %p34 = scmp.ne.s32.totalorder %s26, %s29
      %p35 = scmp.eq.s32.totalorder %s16, 0
      %p36 = por %p34, %p35
      %p37 = scmp.ne.s32.totalorder %s26, %s29
      %p38 = scmp.eq.s32.totalorder %s21, 1
      %p39 = por %p37, %p38
      %p40 = scmp.ne.s32.totalorder %s29, %s30
      %p41 = scmp.eq.s32.totalorder %s21, 0
      %p42 = por %p40, %p41
      %p43 = scmp.ne.s32.totalorder %s29, %s30
      %p44 = scmp.eq.s32.totalorder %s22, 1
      %p45 = por %p43, %p44
      %p47 = scmp.ne.s32.totalorder %s30, %s46
      %p48 = scmp.eq.s32.totalorder %s22, 0
      %p49 = por %p47, %p48
      %s50 = ssub.s32 %s16, %s23
      %p51 = scmp.eq.s32.totalorder %s50, 0
      %s53 = sadd.s32 %s52, 1
      %s54 = scalar_select %p51, %s52, %s53
      %p57 = pneg %p51
      %p58 = scmp.eq.s32.totalorder %s16, 1
      %p59 = por %p57, %p58
      %p60 = scmp.ne.s32.totalorder %s52, %s55
      %p61 = scmp.eq.s32.totalorder %s16, 0
      %p62 = por %p60, %p61
      %p63 = scmp.ne.s32.totalorder %s52, %s55
      %p64 = scmp.eq.s32.totalorder %s21, 1
      %p65 = por %p63, %p64
      %p66 = scmp.ne.s32.totalorder %s55, %s56
      %p67 = scmp.eq.s32.totalorder %s21, 0
      %p68 = por %p66, %p67
      %p69 = scmp.ne.s32.totalorder %s55, %s56
      %p70 = scmp.eq.s32.totalorder %s22, 1
      %p71 = por %p69, %p70
      %p73 = scmp.ne.s32.totalorder %s56, %s72
      %p74 = scmp.eq.s32.totalorder %s22, 0
      %p75 = por %p73, %p74
      %s77 = sadd.s32 %s76, 1
      %p80 = scmp.eq.s32.totalorder %s16, 1
      %p81 = scmp.ne.s32.totalorder %s76, %s78
      %p82 = scmp.eq.s32.totalorder %s16, 0
      %p83 = por %p81, %p82
      %p84 = scmp.ne.s32.totalorder %s76, %s78
      %p85 = scmp.eq.s32.totalorder %s21, 1
      %p86 = por %p84, %p85
      %p87 = scmp.ne.s32.totalorder %s78, %s79
      %p88 = scmp.eq.s32.totalorder %s21, 0
      %p89 = por %p87, %p88
      %p90 = scmp.ne.s32.totalorder %s78, %s79
      %p91 = scmp.eq.s32.totalorder %s22, 1
      %p92 = por %p90, %p91
      %p94 = scmp.ne.s32.totalorder %s79, %s93
      %p95 = scmp.eq.s32.totalorder %s22, 0
      %p96 = por %p94, %p95
      %s97 = ssub.s32 %s16, %s23
      %p98 = scmp.eq.s32.totalorder %s97, 0
      %s100 = sadd.s32 %s99, 1
      %s101 = scalar_select %p98, %s99, %s100
      %p104 = pneg %p98
      %p105 = scmp.eq.s32.totalorder %s16, 1
      %p106 = por %p104, %p105
      %p107 = scmp.ne.s32.totalorder %s99, %s102
      %p108 = scmp.eq.s32.totalorder %s16, 0
      %p109 = por %p107, %p108
      %p110 = scmp.ne.s32.totalorder %s99, %s102
      %p111 = scmp.eq.s32.totalorder %s21, 1
      %p112 = por %p110, %p111
      %p113 = scmp.ne.s32.totalorder %s102, %s103
      %p114 = scmp.eq.s32.totalorder %s21, 0
      %p115 = por %p113, %p114
      %p116 = scmp.ne.s32.totalorder %s102, %s103
      %p117 = scmp.eq.s32.totalorder %s22, 1
      %p118 = por %p116, %p117
      %p120 = scmp.ne.s32.totalorder %s103, %s119
      %p121 = scmp.eq.s32.totalorder %s22, 0
      %p122 = por %p120, %p121
      %s124 = sadd.s32 %s123, 1
      %p127 = scmp.eq.s32.totalorder %s16, 1
      %p128 = scmp.ne.s32.totalorder %s123, %s125
      %p129 = scmp.eq.s32.totalorder %s16, 0
      %p130 = por %p128, %p129
      %p131 = scmp.ne.s32.totalorder %s123, %s125
      %p132 = scmp.eq.s32.totalorder %s21, 1
      %p133 = por %p131, %p132
      %p134 = scmp.ne.s32.totalorder %s125, %s126
      %p135 = scmp.eq.s32.totalorder %s21, 0
      %p136 = por %p134, %p135
      %p137 = scmp.ne.s32.totalorder %s125, %s126
      %p138 = scmp.eq.s32.totalorder %s22, 1
      %p139 = por %p137, %p138
      %p141 = scmp.ne.s32.totalorder %s126, %s140
      %p142 = scmp.eq.s32.totalorder %s22, 0
      %p143 = por %p141, %p142
      %p144 = scmp.le.s32.totalorder 1, %s16
      %p145 = scmp.lt.s32.totalorder %s16, 3
      %p146 = pnand %p144, %p145
      %p147 = pneg %p146
      // Predicated region
      $region9: #{tpu_custom_call.1} parent=5 // pred_check
        _
      $region10: #{tpu_custom_call.1} parent=5 // pred_check_branch
        %149 = sbr.rel (%p146) target = $region12
      $region11: #{tpu_custom_call.1} parent=5 // pred_region
        %s150 = ssub.s32 %s16, 1
        // Predicated region
        $region13: #{tpu_custom_call.1} parent=11 // pred_check
          %p151 = pneg %p89
        $region14: #{tpu_custom_call.1} parent=11 // pred_check_branch
          %153 = sbr.rel (%p151) target = $region16
        $region15: #{tpu_custom_call.1} parent=11 // pred_region
          %155 = vsyncadd [#allocation3], 0
          %s156 = sshll.u32 %s2, 4
          %s157 = int_to_ptr.hbm [resolvable:$true] %s156
          %s158 = sshll.u32 [#allocation2], 4
          %s159 = int_to_ptr.vmem [resolvable:$true] %s158
          %164 = dma.hbm_to_vmem [thread:$0]  %s157, 4096, %s159, [#allocation3], 128, 128, 8
        $region16: #{tpu_custom_call.1} parent=11 // pred_fallthru
          _
      $region12: #{tpu_custom_call.1} parent=5 // pred_fallthru
        _
      %p165 = scmp.lt.s32.totalorder %s16, 2
      // Predicated region
      $region17: #{tpu_custom_call.1} parent=5 // pred_check
        %p166 = pneg %p165
      $region18: #{tpu_custom_call.1} parent=5 // pred_check_branch
        %168 = sbr.rel (%p166) target = $region20
      $region19: #{tpu_custom_call.1} parent=5 // pred_region
        // Predicated region
        $region21: #{tpu_custom_call.1} parent=19 // pred_check
          %p169 = pneg %p36
        $region22: #{tpu_custom_call.1} parent=19 // pred_check_branch
          %171 = sbr.rel (%p169) target = $region24
        $region23: #{tpu_custom_call.1} parent=19 // pred_region
          %p172 = scmp.lt.s32.totalorder %s16, 1
          %s173 = scalar_select %p172, %s16, 1
          %s174 = smul.addr %s173, 8
          %s175 = scalar_lea.vmem %s0, %s174
        $region24: #{tpu_custom_call.1} parent=19 // pred_fallthru
          _
        // Predicated region
        $region25: #{tpu_custom_call.1} parent=19 // pred_check
          %p176 = pneg %p62
        $region26: #{tpu_custom_call.1} parent=19 // pred_check_branch
          %178 = sbr.rel (%p176) target = $region28
        $region27: #{tpu_custom_call.1} parent=19 // pred_region
          %p179 = scmp.lt.s32.totalorder %s16, 1
          %s180 = scalar_select %p179, %s16, 1
          %s181 = smul.addr %s180, 8
          %s182 = scalar_lea.vmem %s1, %s181
        $region28: #{tpu_custom_call.1} parent=19 // pred_fallthru
          _
      $region20: #{tpu_custom_call.1} parent=5 // pred_fallthru
        _
      %p183 = scmp.le.s32.totalorder 1, %s16
      %p184 = scmp.lt.s32.totalorder %s16, 3
      %p185 = pnand %p183, %p184
      %p186 = pneg %p185
      // Predicated region
      $region29: #{tpu_custom_call.1} parent=5 // pred_check
        _
      $region30: #{tpu_custom_call.1} parent=5 // pred_check_branch
        %188 = sbr.rel (%p185) target = $region32
      $region31: #{tpu_custom_call.1} parent=5 // pred_region
        %s189 = ssub.s32 %s16, 1
        // Predicated region
        $region33: #{tpu_custom_call.1} parent=31 // pred_check
          %p190 = pneg %p89
        $region34: #{tpu_custom_call.1} parent=31 // pred_check_branch
          %192 = sbr.rel (%p190) target = $region36
        $region35: #{tpu_custom_call.1} parent=31 // pred_region
          %194 = dma.done [#allocation3], 4096
        $region36: #{tpu_custom_call.1} parent=31 // pred_fallthru
          _
        %p195 = scmp.lt.s32.totalorder %s21, 1
        %s196 = scalar_select %p195, %s21, 1
        %s197 = smul.addr %s196, 8
        %s198 = scalar_lea.vmem %s0, %s197
        %p199 = pneg %p42
        %p200 = pneg %p39
        %p201 = scmp.lt.s32.totalorder %s21, 1
        %s202 = scalar_select %p201, %s21, 1
        %s203 = smul.addr %s202, 8
        %s204 = scalar_lea.vmem %s1, %s203
        %p205 = pneg %p68
        %p206 = pneg %p65
        %p207 = pneg %p89
        %p208 = pneg %p86
        %p209 = pneg %p115
        %p210 = pneg %p112
        %s211 = sand.u32 %s102, 1
        %s212 = scalar_lea.sflag [#allocation4], %s211
        %s213 = sand.u32 %s102, 1
        %s214 = smul.addr %s213, 8
        %s215 = scalar_lea.vmem [#allocation5], %s214
        %p216 = pneg %p136
        %p217 = pneg %p133
        %p218 = scmp.lt.s32.totalorder %s21, 1
        %s219 = scalar_select %p218, %s21, 1
        %s220 = smul.addr %s219, 8
        %s221 = scalar_lea.vmem %s0, %s220
        %p222 = scmp.lt.s32.totalorder %s21, 1
        %s223 = scalar_select %p222, %s21, 1
        %s224 = smul.addr %s223, 8
        %s225 = scalar_lea.vmem %s1, %s224
        %v226 = vlaneseq
        %v227 = vshrl.u32 %v226, 7
        %s228 = smul.u32 %s21, 8
        %v229 = vstv %s228
        %v230 = vadd.s32 %v227, %v229
        %vm231 = vcmp.lt.s32.totalorder %v230, 0
        %v232 = vsub.s32 0, %v230
        %v233 = vsel %vm231, %v232, %v230
        %v234 = vshrl.u32 %v233, 3
        %v235 = vand.u32 %v233, 7
        %v236 = vsub.s32 0, %v235
        %v237 = vsel %vm231, %v236, %v235
        %v238 = vlaneseq
        %v239 = vand.u32 %v238, 127
        %v240 = vadd.s32 %v239, 128
        %v241 = vld [vmem:[%s221] sm:$0xff]
        %242 = vset.pattern.permute.xlu0 0
        %243 = vperm.xlu0 %242, %v241
        %v244 = vpop.permute.xlu0 %243
        %vm245 = vcmp.eq.s32.totalorder %v239, %v244
        %vm246 = vcmp.eq.s32.totalorder %v240, %v244
        %v247 = vadd.s32 %v237, 128
        %vm248 = vcmp.eq.s32.totalorder %v239, %v247
        %vm249 = vcmp.eq.s32.totalorder %v240, %v247
        %vm250 = vmor %vm245, %vm248
        %vm251 = vmor %vm246, %vm249
        %v252 = vsel %vm250, 1, 0
        %v253 = vsel %vm251, 1, 0
        %v254 = vcvt.s32.f32 %v252
        %v255 = vcvt.s32.f32 %v253
        %v256 = vld [vmem:[#allocation2] sm:$0xff]
        %v257 = vld [vmem:[#allocation2 + $0x8] sm:$0xff]
        %v258 = vld [vmem:[#allocation2 + $0x10] sm:$0xff]
        %v259 = vld [vmem:[#allocation2 + $0x18] sm:$0xff]
        %v260 = vld [vmem:[#allocation2 + $0x20] sm:$0xff]
        %v261 = vld [vmem:[#allocation2 + $0x28] sm:$0xff]
        %v262 = vld [vmem:[#allocation2 + $0x30] sm:$0xff]
        %v263 = vld [vmem:[#allocation2 + $0x38] sm:$0xff]
        %v264 = vld [vmem:[#allocation2 + $0x40] sm:$0xff]
        %v265 = vld [vmem:[#allocation2 + $0x48] sm:$0xff]
        %v266 = vld [vmem:[#allocation2 + $0x50] sm:$0xff]
        %v267 = vld [vmem:[#allocation2 + $0x58] sm:$0xff]
        %v268 = vld [vmem:[#allocation2 + $0x60] sm:$0xff]
        %v269 = vld [vmem:[#allocation2 + $0x68] sm:$0xff]
        %v270 = vld [vmem:[#allocation2 + $0x70] sm:$0xff]
        %v271 = vld [vmem:[#allocation2 + $0x78] sm:$0xff]
        %v272 = vld [vmem:[#allocation2 + $0x80] sm:$0xff]
        %v273 = vld [vmem:[#allocation2 + $0x88] sm:$0xff]
        %v274 = vld [vmem:[#allocation2 + $0x90] sm:$0xff]
        %v275 = vld [vmem:[#allocation2 + $0x98] sm:$0xff]
        %v276 = vld [vmem:[#allocation2 + $0xa0] sm:$0xff]
        %v277 = vld [vmem:[#allocation2 + $0xa8] sm:$0xff]
        %v278 = vld [vmem:[#allocation2 + $0xb0] sm:$0xff]
        %v279 = vld [vmem:[#allocation2 + $0xb8] sm:$0xff]
        %v280 = vld [vmem:[#allocation2 + $0xc0] sm:$0xff]
        %v281 = vld [vmem:[#allocation2 + $0xc8] sm:$0xff]
        %v282 = vld [vmem:[#allocation2 + $0xd0] sm:$0xff]
        %v283 = vld [vmem:[#allocation2 + $0xd8] sm:$0xff]
        %v284 = vld [vmem:[#allocation2 + $0xe0] sm:$0xff]
        %v285 = vld [vmem:[#allocation2 + $0xe8] sm:$0xff]
        %v286 = vld [vmem:[#allocation2 + $0xf0] sm:$0xff]
        %v287 = vld [vmem:[#allocation2 + $0xf8] sm:$0xff]
        %288 = vmatpush.msra.mxu0 %v271
        %289 = vmatpush.msra.mxu0 %v270
        %290 = vmatpush.msra.mxu0 %v269
        %291 = vmatpush.msra.mxu0 %v268
        %292 = vmatpush.msra.mxu0 %v267
        %293 = vmatpush.msra.mxu0 %v266
        %294 = vmatpush.msra.mxu0 %v265
        %295 = vmatpush.msra.mxu0 %v264
        %296 = vmatpush.msra.mxu0 %v263
        %297 = vmatpush.msra.mxu0 %v262
        %298 = vmatpush.msra.mxu0 %v261
        %299 = vmatpush.msra.mxu0 %v260
        %300 = vmatpush.msra.mxu0 %v259
        %301 = vmatpush.msra.mxu0 %v258
        %302 = vmatpush.msra.mxu0 %v257
        %303 = vmatpush.msra.mxu0 %v256
        %304 = vmatmul.f32.gmra.mxu0 %v254
        %v305 = vpop.f32.mrf.mxu0
        %v306 = vadd.f32 0.0, %v305
        %307 = vdwg.mxu0
        %308 = vmatpush.msra.mxu0 %v287
        %309 = vmatpush.msra.mxu0 %v286
        %310 = vmatpush.msra.mxu0 %v285
        %311 = vmatpush.msra.mxu0 %v284
        %312 = vmatpush.msra.mxu0 %v283
        %313 = vmatpush.msra.mxu0 %v282
        %314 = vmatpush.msra.mxu0 %v281
        %315 = vmatpush.msra.mxu0 %v280
        %316 = vmatpush.msra.mxu0 %v279
        %317 = vmatpush.msra.mxu0 %v278
        %318 = vmatpush.msra.mxu0 %v277
        %319 = vmatpush.msra.mxu0 %v276
        %320 = vmatpush.msra.mxu0 %v275
        %321 = vmatpush.msra.mxu0 %v274
        %322 = vmatpush.msra.mxu0 %v273
        %323 = vmatpush.msra.mxu0 %v272
        %324 = vmatmul.f32.gmra.mxu0 %v255
        %v325 = vpop.f32.mrf.mxu0
        %v326 = vadd.f32 %v306, %v325
        %327 = vdwg.mxu0
        %328 = vst [vmem:[%s215] sm:$0xff] %v326
        %329 = vmax.xlane.f32.xlu0 %v326
        %v330 = vpop.xlane.xlu0 %329
        %v331 = vsub.f32 %v326, %v330
        %v332 = vmul.f32 %v331, 1.442695
        %v333 = vpow.pop %v332
        %334 = vadd.xlane.f32.xlu0 %v333
        %v335 = vpop.xlane.xlu0 %334
        %v336 = vlog2.pop %v335
        %v337 = vmul.f32 %v336, 0.6931472
        %v338 = vadd.f32 %v330, %v337
        %v339 = vld [vmem:[%s225] sm:$0xff]
        %340 = vset.pattern.permute.xlu0 0
        %341 = vperm.xlu0 %340, %v339
        %v342 = vpop.permute.xlu0 %341
        %vm343 = vcmp.eq.s32.totalorder %v342, %v239
        %v344 = vsel %vm343, %v326, 0.0
        %345 = vadd.xlane.f32.xlu0 %v344
        %v346 = vpop.xlane.xlu0 %345
        %v347 = vsub.f32 %v338, %v346
        %v348 = vrot.slane %v347, 4
        %v349 = vadd.f32 %v347, %v348
        %v350 = vrot.slane %v349, 2
        %v351 = vadd.f32 %v349, %v350
        %v352 = vrot.slane %v351, 1
        %v353 = vadd.f32 %v351, %v352
        %p354 = scmp.eq.s32.totalorder %s21, 0
        // Predicated region
        $region37: #{tpu_custom_call.1} parent=31 // pred_check
          %p355 = pneg %p354
        $region38: #{tpu_custom_call.1} parent=31 // pred_check_branch
          %357 = sbr.rel (%p355) target = $region40
        $region39: #{tpu_custom_call.1} parent=31 // pred_region
          %vm358 = vcmask 0
          %359 = vst.msk [vmem:[#allocation6] sm:$0x1] %vm358, 0.0
        $region40: #{tpu_custom_call.1} parent=31 // pred_fallthru
          _
        %v360 = vld [vmem:[#allocation6] sm:$0x1]
        %v361 = vadd.f32 %v360, %v353
        %vm362 = vcmask 0
        %363 = vst.msk [vmem:[#allocation6] sm:$0x1] %vm362, %v361
        %p364 = scmp.eq.s32.totalorder %s21, 1
        // Predicated region
        $region41: #{tpu_custom_call.1} parent=31 // pred_check
          %p365 = pneg %p364
        $region42: #{tpu_custom_call.1} parent=31 // pred_check_branch
          %367 = sbr.rel (%p365) target = $region44
        $region43: #{tpu_custom_call.1} parent=31 // pred_region
          %v368 = vld [vmem:[#allocation6] sm:$0x1]
          %v369 = vmul.f32 %v368, 0.0625
          %370 = vst.msk [vmem:[#allocation6] sm:$0x1] %vm362, %v369
        $region44: #{tpu_custom_call.1} parent=31 // pred_fallthru
          _
        %s371 = sand.u32 %s102, 1
        %s372 = scalar_lea.sflag [#allocation4], %s371
        %s373 = sand.u32 %s102, 1
        %s374 = smul.addr %s373, 8
        %s375 = scalar_lea.vmem [#allocation5], %s374
        // Predicated region
        $region45: #{tpu_custom_call.1} parent=31 // pred_check
          %p376 = pneg %p112
        $region46: #{tpu_custom_call.1} parent=31 // pred_check_branch
          %378 = sbr.rel (%p376) target = $region48
        $region47: #{tpu_custom_call.1} parent=31 // pred_region
          %380 = vsyncadd %s372, 0
          %s381 = smul.addr %s21, 8
          %s382 = scalar_lea.hbm %s3, %s381
          %s384 = sshll.u32 %s375, 4
          %s385 = int_to_ptr.vmem [resolvable:$true] %s384
          %s386 = sshll.u32 %s382, 4
          %s387 = int_to_ptr.hbm [resolvable:$true] %s386
          %389 = dma.vmem_to_hbm [thread:$0]  %s385, 128, %s387, %s372
        $region48: #{tpu_custom_call.1} parent=31 // pred_fallthru
          _
        // Predicated region
        $region49: #{tpu_custom_call.1} parent=31 // pred_check
          %p390 = pneg %p133
        $region50: #{tpu_custom_call.1} parent=31 // pred_check_branch
          %392 = sbr.rel (%p390) target = $region52
        $region51: #{tpu_custom_call.1} parent=31 // pred_region
          %394 = vsyncadd [#allocation7], 0
          %s396 = sshll.u32 [#allocation6], 4
          %s397 = int_to_ptr.vmem [resolvable:$true] %s396
          %s398 = sshll.u32 %s4, 4
          %s399 = int_to_ptr.hbm [resolvable:$true] %s398
          %401 = dma.vmem_to_hbm [thread:$0]  %s397, 16, %s399, [#allocation7]
        $region52: #{tpu_custom_call.1} parent=31 // pred_fallthru
          _
        // Predicated region
        $region53: #{tpu_custom_call.1} parent=31 // pred_check
          %p402 = pneg %p133
        $region54: #{tpu_custom_call.1} parent=31 // pred_check_branch
          %404 = sbr.rel (%p402) target = $region56
        $region55: #{tpu_custom_call.1} parent=31 // pred_region
          %406 = dma.done [#allocation7], 16
        $region56: #{tpu_custom_call.1} parent=31 // pred_fallthru
          _
      $region32: #{tpu_custom_call.1} parent=5 // pred_fallthru
        _
      %p407 = scmp.le.s32.totalorder 2, %s16
      // Predicated region
      $region57: #{tpu_custom_call.1} parent=5 // pred_check
        %p408 = pneg %p407
      $region58: #{tpu_custom_call.1} parent=5 // pred_check_branch
        %410 = sbr.rel (%p408) target = $region60
      $region59: #{tpu_custom_call.1} parent=5 // pred_region
        %s411 = ssub.s32 %s16, 2
        // Predicated region
        $region61: #{tpu_custom_call.1} parent=59 // pred_check
          %p412 = pneg %p118
        $region62: #{tpu_custom_call.1} parent=59 // pred_check_branch
          %414 = sbr.rel (%p412) target = $region64
        $region63: #{tpu_custom_call.1} parent=59 // pred_region
          %s415 = sand.u32 %s103, 1
          %s416 = scalar_lea.sflag [#allocation4], %s415
          %s417 = sand.u32 %s103, 1
          %s418 = smul.addr %s417, 8
          %s419 = scalar_lea.vmem [#allocation5], %s418
          %421 = dma.done %s416, 128
        $region64: #{tpu_custom_call.1} parent=59 // pred_fallthru
          _
      $region60: #{tpu_custom_call.1} parent=5 // pred_fallthru
        _
    $region6: #{tpu_custom_call.1} parent=1 // loop_footer
      %s20 = sadd.s32 1, %s16
    $region7: #{tpu_custom_call.1} parent=1 // loop_footer_branch
      %15 = sbr.rel target = $region3
    $region8: #{tpu_custom_call.1} parent=1 // loop_exit
      _
    %422 = vsyncpa [#allocation3], 1
    %s423 = scalar_lea.sflag [#allocation3], 1
    %424 = vsyncpa %s423, 1
    %425 = vsyncpa [#allocation4], 1
    %s426 = scalar_lea.sflag [#allocation4], 1
    %427 = vsyncpa %s426, 1
    %428 = vsyncpa [#allocation7], 1

</llo_original>
